<compile_context>
chip_gen: v5e
topology: v5e:2x2
jax: 0.10.0
libtpu: 0.0.40
codegen_flags: <defaults>
</compile_context>

<pallas_src>
import functools

import jax
import jax.numpy as jnp
from jax.experimental import pallas as pl
from jax.experimental.pallas import tpu as pltpu

_SUBLANE = 8  # f32 sublane granularity


def filter_network_kernel(x_ref, w1_ref, b1_ref, w2_ref, b2_ref, o_ref, *,
                          act_dtype):
    """One row-tile.

    x_ref:  [TILE_N, F] f32     w1_ref: [F, H] f32     b1_ref: [1, H] f32
    w2_ref: [H, H] f32          b2_ref: [1, H] f32     o_ref:  [TILE_N, H]
    """
    # Layer 1: [TILE_N, F] @ [F, H] -> [TILE_N, H], f32 accumulation on the MXU.
    pre1 = (jnp.dot(x_ref[...], w1_ref[...], preferred_element_type=jnp.float32)
            + b1_ref[...])
    hid = jnp.tanh(pre1.astype(act_dtype)).astype(jnp.float32)

    # Layer 2: [TILE_N, H] @ [H, H] -> [TILE_N, H].
    pre2 = (jnp.dot(hid, w2_ref[...], preferred_element_type=jnp.float32)
            + b2_ref[...])

    # sigmoid(z) == 0.5 * (tanh(0.5 * z) + 1): one transcendental, no divide.
    sig = 0.5 * (jnp.tanh((0.5 * pre2).astype(act_dtype)).astype(jnp.float32)
                 + 1.0)
    o_ref[...] = sig.astype(o_ref.dtype)


def filter_network_forward(x, w1, b1, w2, b2, *, tile_n=4096,
                           out_dtype=None, act_dtype=jnp.float32):
    """FilterNetwork.forward for one filter layer (current_layer's params).

    x:  [N, F]               (current_state)
    w1: [H, F], b1: [H]      (PyTorch Linear layout: [out, in])
    w2: [H, H], b2: [H]
    returns [N, H] == sigmoid(tanh(x @ w1.T + b1) @ w2.T + b2)
    """
    n, f = x.shape
    h = w1.shape[0]
    out_dtype = x.dtype if out_dtype is None else out_dtype

    # --- Tile selection ------------------------------------------------------
    # Big tiles amortize per-grid-step overhead; >= 2 grid steps keep both v7x
    # TensorCores busy; fitting the tile to N keeps padding <= 7 rows.
    if n > _SUBLANE:
        num_tiles = max(2, pl.cdiv(n, max(int(tile_n), _SUBLANE)))
    else:
        num_tiles = 1
    tile_rows = _SUBLANE * pl.cdiv(n, _SUBLANE * num_tiles)
    n_pad = tile_rows * num_tiles

    x_p = x.astype(jnp.float32)
    if n_pad != n:
        x_p = jnp.pad(x_p, ((0, n_pad - n), (0, 0)))

    # Tiny one-time parameter relayouts ([out,in] -> [in,out], bias as a row);
    # negligible next to the N-sized arrays we no longer transpose.
    w1t = jnp.transpose(w1).astype(jnp.float32)        # [F, H]
    w2t = jnp.transpose(w2).astype(jnp.float32)        # [H, H]
    b1r = b1.reshape(1, h).astype(jnp.float32)         # [1, H]
    b2r = b2.reshape(1, h).astype(jnp.float32)         # [1, H]

    cost = pl.CostEstimate(
        flops=2 * n_pad * (f * h + h * h),
        transcendentals=2 * n_pad * h,
        bytes_accessed=(n_pad * f * 4                        # x
                        + (f * h + h * h + 2 * h) * 4        # params
                        + n_pad * h * jnp.dtype(out_dtype).itemsize),  # out
    )

    out = pl.pallas_call(
        functools.partial(filter_network_kernel, act_dtype=act_dtype),
        out_shape=jax.ShapeDtypeStruct((n_pad, h), out_dtype),
        grid=(num_tiles,),
        in_specs=[
            pl.BlockSpec((tile_rows, f), lambda i: (i, 0)),   # x tile (pipelined)
            pl.BlockSpec((f, h), lambda i: (0, 0)),           # w1^T: VMEM-resident
            pl.BlockSpec((1, h), lambda i: (0, 0)),           # b1
            pl.BlockSpec((h, h), lambda i: (0, 0)),           # w2^T
            pl.BlockSpec((1, h), lambda i: (0, 0)),           # b2
        ],
        out_specs=pl.BlockSpec((tile_rows, h), lambda i: (i, 0)),
        compiler_params=pltpu.CompilerParams(
            dimension_semantics=("parallel",),   # shard row-tiles across TCs (v7x)
            vmem_limit_bytes=32 * 1024 * 1024,   # explicit, ample headroom
        ),
        cost_estimate=cost,
    )(x_p, w1t, b1r, w2t, b2r)

    if n_pad != n:
        out = out[:n]
    return out


def init_params(key, input_features, hidden_dim):
    """PyTorch-Linear-style init, PyTorch layout: W [out, in], b [out]."""
    k1, k2, k3, k4 = jax.random.split(key, 4)
    bound1 = 1.0 / jnp.sqrt(input_features)
    bound2 = 1.0 / jnp.sqrt(hidden_dim)
    w1 = jax.random.uniform(k1, (hidden_dim, input_features), jnp.float32,
                            -bound1, bound1)
    b1 = jax.random.uniform(k2, (hidden_dim,), jnp.float32, -bound1, bound1)
    w2 = jax.random.uniform(k3, (hidden_dim, hidden_dim), jnp.float32,
                            -bound2, bound2)
    b2 = jax.random.uniform(k4, (hidden_dim,), jnp.float32, -bound2, bound2)
    return w1, b1, w2, b2


if __name__ == "__main__":
    input_features = 16
    hidden_dim = 32     # config['hidden_dim']
    n = 300             # node/state rows -> 2 grid steps of 152 rows (4 pad rows)

    key = jax.random.PRNGKey(0)
    kx, kp = jax.random.split(key)
    x = jax.random.normal(kx, (n, input_features), jnp.float32)
    w1, b1, w2, b2 = init_params(kp, input_features, hidden_dim)

    out = filter_network_forward(x, w1, b1, w2, b2)
    out = jax.block_until_ready(out)
    assert out.shape == (n, hidden_dim)

    # Reference: full-f32 PyTorch semantics.
    ref = jax.nn.sigmoid(jnp.tanh(x @ w1.T + b1[None, :]) @ w2.T + b2[None, :])
    assert jnp.allclose(out, ref, atol=2e-2), (
        f"mismatch vs f32 reference: max|diff|={float(jnp.max(jnp.abs(out - ref)))}")

    # TODO(synk): add_one_layer_to_filter / ModuleList growth is host-side
    # Python state; each layer's (w1, b1, w2, b2) is simply passed to this
    # wrapper.  For many tiny per-layer / per-timestep calls, stack the layer
    # params along a leading axis and add a grid axis over layers (or scalar-
    # prefetch layer ids) to amortize launch / per-step overhead.
    print("KERNEL_OK")
</pallas_src>

<mosaic_0001>
module attributes {stable_mosaic.version = 11 : i64} {
  func.func @filter_network_kernel(%arg0: i32, %arg1: memref<152x16xf32, #tpu.memory_space<vmem>>, %arg2: memref<16x32xf32, #tpu.memory_space<vmem>>, %arg3: memref<1x32xf32, #tpu.memory_space<vmem>>, %arg4: memref<32x32xf32, #tpu.memory_space<vmem>>, %arg5: memref<1x32xf32, #tpu.memory_space<vmem>>, %arg6: memref<152x32xf32, #tpu.memory_space<vmem>>) attributes {dimension_semantics = [#tpu.dimension_semantics<parallel>], iteration_bounds = array<i64: 2>, scalar_prefetch = 0 : i64, scratch_operands = 0 : i64, tpu.core_type = #tpu.core_type<tc>, window_params = [{transform_indices = @transform_0, window_bounds = array<i64: 152, 16>}, {pipeline_mode = #tpu.pipeline_mode<synchronous>, transform_indices = @transform_1, window_bounds = array<i64: 16, 32>}, {pipeline_mode = #tpu.pipeline_mode<synchronous>, transform_indices = @transform_2, window_bounds = array<i64: 1, 32>}, {pipeline_mode = #tpu.pipeline_mode<synchronous>, transform_indices = @transform_3, window_bounds = array<i64: 32, 32>}, {pipeline_mode = #tpu.pipeline_mode<synchronous>, transform_indices = @transform_4, window_bounds = array<i64: 1, 32>}, {transform_indices = @transform_5, window_bounds = array<i64: 152, 32>}]} {
    %c0 = arith.constant 0 : index
    %c0_0 = arith.constant 0 : index
    %0 = vector.load %arg1[%c0, %c0_0] : memref<152x16xf32, #tpu.memory_space<vmem>>, vector<152x16xf32>
    %c0_1 = arith.constant 0 : index
    %c0_2 = arith.constant 0 : index
    %1 = vector.load %arg2[%c0_1, %c0_2] : memref<16x32xf32, #tpu.memory_space<vmem>>, vector<16x32xf32>
    %cst = arith.constant dense<0.000000e+00> : vector<152x32xf32>
    %2 = tpu.matmul %0, %1, %cst {dimension_numbers = #tpu.dot_dimension_numbers<[1], [0], [0], [1], [0, 0, 1, 1], [], []>} : vector<152x16xf32>, vector<16x32xf32>, vector<152x32xf32> -> vector<152x32xf32>
    %c0_3 = arith.constant 0 : index
    %c0_4 = arith.constant 0 : index
    %3 = vector.load %arg3[%c0_3, %c0_4] : memref<1x32xf32, #tpu.memory_space<vmem>>, vector<1x32xf32>
    %4 = vector.broadcast %3 : vector<1x32xf32> to vector<152x32xf32>
    %5 = arith.addf %2, %4 : vector<152x32xf32>
    %6 = math.tanh %5 : vector<152x32xf32>
    %c0_5 = arith.constant 0 : index
    %c0_6 = arith.constant 0 : index
    %7 = vector.load %arg4[%c0_5, %c0_6] : memref<32x32xf32, #tpu.memory_space<vmem>>, vector<32x32xf32>
    %cst_7 = arith.constant dense<0.000000e+00> : vector<152x32xf32>
    %8 = tpu.matmul %6, %7, %cst_7 {dimension_numbers = #tpu.dot_dimension_numbers<[1], [0], [0], [1], [0, 0, 1, 1], [], []>} : vector<152x32xf32>, vector<32x32xf32>, vector<152x32xf32> -> vector<152x32xf32>
    %c0_8 = arith.constant 0 : index
    %c0_9 = arith.constant 0 : index
    %9 = vector.load %arg5[%c0_8, %c0_9] : memref<1x32xf32, #tpu.memory_space<vmem>>, vector<1x32xf32>
    %10 = vector.broadcast %9 : vector<1x32xf32> to vector<152x32xf32>
    %11 = arith.addf %8, %10 : vector<152x32xf32>
    %cst_10 = arith.constant 5.000000e-01 : f32
    %12 = vector.broadcast %cst_10 : f32 to vector<152x32xf32>
    %13 = arith.mulf %12, %11 : vector<152x32xf32>
    %14 = math.tanh %13 : vector<152x32xf32>
    %cst_11 = arith.constant 1.000000e+00 : f32
    %15 = vector.broadcast %cst_11 : f32 to vector<152x32xf32>
    %16 = arith.addf %14, %15 : vector<152x32xf32>
    %cst_12 = arith.constant 5.000000e-01 : f32
    %17 = vector.broadcast %cst_12 : f32 to vector<152x32xf32>
    %18 = arith.mulf %17, %16 : vector<152x32xf32>
    %c0_13 = arith.constant 0 : index
    %c0_14 = arith.constant 0 : index
    %19 = vector.load %arg6[%c0_13, %c0_14] : memref<152x32xf32, #tpu.memory_space<vmem>>, vector<152x32xf32>
    tpu.vector_store %arg6[%c0_13, %c0_14], %18 {strides = array<i32>} : memref<152x32xf32, #tpu.memory_space<vmem>>, vector<152x32xf32>,
    return
  }
  func.func @transform_0(%arg0: i32) -> (i32, i32) {
    %c0_i32 = arith.constant 0 : i32
    %c0_i32_0 = arith.constant 0 : i32
    return %arg0, %c0_i32 : i32, i32
  }
  func.func @transform_1(%arg0: i32) -> (i32, i32) {
    %c0_i32 = arith.constant 0 : i32
    %c0_i32_0 = arith.constant 0 : i32
    %c0_i32_1 = arith.constant 0 : i32
    return %c0_i32, %c0_i32_0 : i32, i32
  }
  func.func @transform_2(%arg0: i32) -> (i32, i32) {
    %c0_i32 = arith.constant 0 : i32
    %c0_i32_0 = arith.constant 0 : i32
    %c0_i32_1 = arith.constant 0 : i32
    return %c0_i32, %c0_i32_0 : i32, i32
  }
  func.func @transform_3(%arg0: i32) -> (i32, i32) {
    %c0_i32 = arith.constant 0 : i32
    %c0_i32_0 = arith.constant 0 : i32
    %c0_i32_1 = arith.constant 0 : i32
    return %c0_i32, %c0_i32_0 : i32, i32
  }
  func.func @transform_4(%arg0: i32) -> (i32, i32) {
    %c0_i32 = arith.constant 0 : i32
    %c0_i32_0 = arith.constant 0 : i32
    %c0_i32_1 = arith.constant 0 : i32
    return %c0_i32, %c0_i32_0 : i32, i32
  }
  func.func @transform_5(%arg0: i32) -> (i32, i32) {
    %c0_i32 = arith.constant 0 : i32
    %c0_i32_0 = arith.constant 0 : i32
    return %arg0, %c0_i32 : i32, i32
  }
}

</mosaic_0001>

<llo_original>
// kernel: tpu_custom_call.1
$region0: #{tpu_custom_call.1}
  #allocation0 [shape = 'u32[]', space=smem, size = 0x4, offset = 0x4, fixed_abs, tag = 'smem constant byte address 0x4 - core index']
  #allocation1 [shape = 'u32[72,128]{1,0:T(1,128)}', space=vmem, size = 0x9000, scoped, tag = 'internal scratch']
  %s0 = inlined_call_operand.vmem [shape: f32[304,16], index: 0, kind: input, shape index: {}]
  %s1 = inlined_call_operand.vmem [shape: f32[16,32], index: 1, kind: input, shape index: {}]
  %s2 = inlined_call_operand.vmem [shape: f32[1,32], index: 2, kind: input, shape index: {}]
  %s3 = inlined_call_operand.vmem [shape: f32[32,32], index: 3, kind: input, shape index: {}]
  %s4 = inlined_call_operand.vmem [shape: f32[1,32], index: 4, kind: input, shape index: {}]
  %s5 = inlined_call_operand.vmem [shape: f32[304,32], index: 5, kind: output, shape index: {}]
  %s6 = sld [smem:[#allocation0]]
  $region53: #{tpu_custom_call.1} parent=0
    _
  %s8 = ssub.s32 1, %s6
  %s9 = scalar_select 0, %s8, %s6
  loop: start=0, step=1, limit=4
  $region2: #{tpu_custom_call.1} parent=0 // loop_pre_header
    _
  $region3: #{tpu_custom_call.1} parent=0 // loop_header
    %s11 = sphi 0, %s15
    %p12 = scmp.ge.s32.totalorder %s11, 4
    %s21 = sphi 0, %s23
    %s24 = sphi 0, %s21
    %s25 = sphi 0, %s24
    %s41 = sphi 0, %s25
    %s45 = sphi 0, %s45
    %s47 = sphi 0, %s45
    %s48 = sphi 0, %s47
    %s62 = sphi 0, %s48
    %s66 = sphi 0, %s66
    %s68 = sphi 0, %s66
    %s69 = sphi 0, %s68
    %s83 = sphi 0, %s69
    %s87 = sphi 0, %s87
    %s89 = sphi 0, %s87
    %s90 = sphi 0, %s89
    %s104 = sphi 0, %s90
    %s108 = sphi 0, %s108
    %s110 = sphi 0, %s108
    %s111 = sphi 0, %s110
    %s125 = sphi 0, %s111
    %s131 = sphi 0, %s133
    %s134 = sphi 0, %s131
    %s135 = sphi 0, %s134
    %s151 = sphi 0, %s135
  $region4: #{tpu_custom_call.1} parent=0 // loop_header_branch
    %14 = sbr.rel (%p12) target = $region8
  $region5: #{tpu_custom_call.1} parent=0 // loop_body
    %s16 = ssub.s32 %s11, 1
    %s17 = ssub.s32 %s11, 2
    %s18 = sadd.s32 %s11, 1
    %s19 = ssub.s32 %s11, %s18
    %p20 = scmp.eq.s32.totalorder %s19, 0
    %s22 = sadd.s32 %s21, 1
    %s23 = scalar_select %p20, %s21, %s22
    %p26 = pneg %p20
    %p27 = scmp.eq.s32.totalorder %s11, 1
    %p28 = por %p26, %p27
    %p29 = scmp.ne.s32.totalorder %s21, %s24
    %p30 = scmp.eq.s32.totalorder %s11, 0
    %p31 = por %p29, %p30
    %p32 = scmp.ne.s32.totalorder %s21, %s24
    %p33 = scmp.eq.s32.totalorder %s16, 1
    %p34 = por %p32, %p33
    %p35 = scmp.ne.s32.totalorder %s24, %s25
    %p36 = scmp.eq.s32.totalorder %s16, 0
    %p37 = por %p35, %p36
    %p38 = scmp.ne.s32.totalorder %s24, %s25
    %p39 = scmp.eq.s32.totalorder %s17, 1
    %p40 = por %p38, %p39
    %p42 = scmp.ne.s32.totalorder %s25, %s41
    %p43 = scmp.eq.s32.totalorder %s17, 0
    %p44 = por %p42, %p43
    %s46 = sadd.s32 %s45, 1
    %p49 = scmp.eq.s32.totalorder %s11, 1
    %p50 = scmp.ne.s32.totalorder %s45, %s47
    %p51 = scmp.eq.s32.totalorder %s11, 0
    %p52 = por %p50, %p51
    %p53 = scmp.ne.s32.totalorder %s45, %s47
    %p54 = scmp.eq.s32.totalorder %s16, 1
    %p55 = por %p53, %p54
    %p56 = scmp.ne.s32.totalorder %s47, %s48
    %p57 = scmp.eq.s32.totalorder %s16, 0
    %p58 = por %p56, %p57
    %p59 = scmp.ne.s32.totalorder %s47, %s48
    %p60 = scmp.eq.s32.totalorder %s17, 1
    %p61 = por %p59, %p60
    %p63 = scmp.ne.s32.totalorder %s48, %s62
    %p64 = scmp.eq.s32.totalorder %s17, 0
    %p65 = por %p63, %p64
    %s67 = sadd.s32 %s66, 1
    %p70 = scmp.eq.s32.totalorder %s11, 1
    %p71 = scmp.ne.s32.totalorder %s66, %s68
    %p72 = scmp.eq.s32.totalorder %s11, 0
    %p73 = por %p71, %p72
    %p74 = scmp.ne.s32.totalorder %s66, %s68
    %p75 = scmp.eq.s32.totalorder %s16, 1
    %p76 = por %p74, %p75
    %p77 = scmp.ne.s32.totalorder %s68, %s69
    %p78 = scmp.eq.s32.totalorder %s16, 0
    %p79 = por %p77, %p78
    %p80 = scmp.ne.s32.totalorder %s68, %s69
    %p81 = scmp.eq.s32.totalorder %s17, 1
    %p82 = por %p80, %p81
    %p84 = scmp.ne.s32.totalorder %s69, %s83
    %p85 = scmp.eq.s32.totalorder %s17, 0
    %p86 = por %p84, %p85
    %s88 = sadd.s32 %s87, 1
    %p91 = scmp.eq.s32.totalorder %s11, 1
    %p92 = scmp.ne.s32.totalorder %s87, %s89
    %p93 = scmp.eq.s32.totalorder %s11, 0
    %p94 = por %p92, %p93
    %p95 = scmp.ne.s32.totalorder %s87, %s89
    %p96 = scmp.eq.s32.totalorder %s16, 1
    %p97 = por %p95, %p96
    %p98 = scmp.ne.s32.totalorder %s89, %s90
    %p99 = scmp.eq.s32.totalorder %s16, 0
    %p100 = por %p98, %p99
    %p101 = scmp.ne.s32.totalorder %s89, %s90
    %p102 = scmp.eq.s32.totalorder %s17, 1
    %p103 = por %p101, %p102
    %p105 = scmp.ne.s32.totalorder %s90, %s104
    %p106 = scmp.eq.s32.totalorder %s17, 0
    %p107 = por %p105, %p106
    %s109 = sadd.s32 %s108, 1
    %p112 = scmp.eq.s32.totalorder %s11, 1
    %p113 = scmp.ne.s32.totalorder %s108, %s110
    %p114 = scmp.eq.s32.totalorder %s11, 0
    %p115 = por %p113, %p114
    %p116 = scmp.ne.s32.totalorder %s108, %s110
    %p117 = scmp.eq.s32.totalorder %s16, 1
    %p118 = por %p116, %p117
    %p119 = scmp.ne.s32.totalorder %s110, %s111
    %p120 = scmp.eq.s32.totalorder %s16, 0
    %p121 = por %p119, %p120
    %p122 = scmp.ne.s32.totalorder %s110, %s111
    %p123 = scmp.eq.s32.totalorder %s17, 1
    %p124 = por %p122, %p123
    %p126 = scmp.ne.s32.totalorder %s111, %s125
    %p127 = scmp.eq.s32.totalorder %s17, 0
    %p128 = por %p126, %p127
    %s129 = ssub.s32 %s11, %s18
    %p130 = scmp.eq.s32.totalorder %s129, 0
    %s132 = sadd.s32 %s131, 1
    %s133 = scalar_select %p130, %s131, %s132
    %p136 = pneg %p130
    %p137 = scmp.eq.s32.totalorder %s11, 1
    %p138 = por %p136, %p137
    %p139 = scmp.ne.s32.totalorder %s131, %s134
    %p140 = scmp.eq.s32.totalorder %s11, 0
    %p141 = por %p139, %p140
    %p142 = scmp.ne.s32.totalorder %s131, %s134
    %p143 = scmp.eq.s32.totalorder %s16, 1
    %p144 = por %p142, %p143
    %p145 = scmp.ne.s32.totalorder %s134, %s135
    %p146 = scmp.eq.s32.totalorder %s16, 0
    %p147 = por %p145, %p146
    %p148 = scmp.ne.s32.totalorder %s134, %s135
    %p149 = scmp.eq.s32.totalorder %s17, 1
    %p150 = por %p148, %p149
    %p152 = scmp.ne.s32.totalorder %s135, %s151
    %p153 = scmp.eq.s32.totalorder %s17, 0
    %p154 = por %p152, %p153
    %p155 = scmp.le.s32.totalorder 1, %s11
    %p156 = scmp.lt.s32.totalorder %s11, 3
    %p157 = pnand %p155, %p156
    %p158 = pneg %p157
    // Predicated region
    $region9: #{tpu_custom_call.1} parent=5 // pred_check
      _
    $region10: #{tpu_custom_call.1} parent=5 // pred_check_branch
      %160 = sbr.rel (%p157) target = $region12
    $region11: #{tpu_custom_call.1} parent=5 // pred_region
      %s161 = ssub.s32 %s11, 1
      // Predicated region
      $region13: #{tpu_custom_call.1} parent=11 // pred_check
        %p162 = pneg %p58
      $region14: #{tpu_custom_call.1} parent=11 // pred_check_branch
        %164 = sbr.rel (%p162) target = $region16
      $region15: #{tpu_custom_call.1} parent=11 // pred_region
        _
      $region16: #{tpu_custom_call.1} parent=11 // pred_fallthru
        _
      // Predicated region
      $region17: #{tpu_custom_call.1} parent=11 // pred_check
        %p165 = pneg %p79
      $region18: #{tpu_custom_call.1} parent=11 // pred_check_branch
        %167 = sbr.rel (%p165) target = $region20
      $region19: #{tpu_custom_call.1} parent=11 // pred_region
        _
      $region20: #{tpu_custom_call.1} parent=11 // pred_fallthru
        _
      // Predicated region
      $region21: #{tpu_custom_call.1} parent=11 // pred_check
        %p168 = pneg %p100
      $region22: #{tpu_custom_call.1} parent=11 // pred_check_branch
        %170 = sbr.rel (%p168) target = $region24
      $region23: #{tpu_custom_call.1} parent=11 // pred_region
        _
      $region24: #{tpu_custom_call.1} parent=11 // pred_fallthru
        _
      // Predicated region
      $region25: #{tpu_custom_call.1} parent=11 // pred_check
        %p171 = pneg %p121
      $region26: #{tpu_custom_call.1} parent=11 // pred_check_branch
        %173 = sbr.rel (%p171) target = $region28
      $region27: #{tpu_custom_call.1} parent=11 // pred_region
        _
      $region28: #{tpu_custom_call.1} parent=11 // pred_fallthru
        _
    $region12: #{tpu_custom_call.1} parent=5 // pred_fallthru
      _
    %p174 = scmp.lt.s32.totalorder %s11, 2
    // Predicated region
    $region29: #{tpu_custom_call.1} parent=5 // pred_check
      %p175 = pneg %p174
    $region30: #{tpu_custom_call.1} parent=5 // pred_check_branch
      %177 = sbr.rel (%p175) target = $region32
    $region31: #{tpu_custom_call.1} parent=5 // pred_region
      // Predicated region
      $region33: #{tpu_custom_call.1} parent=31 // pred_check
        %p178 = pneg %p31
      $region34: #{tpu_custom_call.1} parent=31 // pred_check_branch
        %180 = sbr.rel (%p178) target = $region36
      $region35: #{tpu_custom_call.1} parent=31 // pred_region
        %s181 = smul.u32 19, %s11
        %p182 = scmp.lt.s32.totalorder %s181, 37
        %s183 = scalar_select %p182, %s181, 37
        %s184 = smul.addr %s183, 8
        %s185 = scalar_lea.vmem %s0, %s184
        %s186 = smul.u32 19, %s11
      $region36: #{tpu_custom_call.1} parent=31 // pred_fallthru
        _
    $region32: #{tpu_custom_call.1} parent=5 // pred_fallthru
      _
    %p187 = scmp.le.s32.totalorder 1, %s11
    %p188 = scmp.lt.s32.totalorder %s11, 3
    %p189 = pnand %p187, %p188
    %p190 = pneg %p189
    // Predicated region
    $region37: #{tpu_custom_call.1} parent=5 // pred_check
      _
    $region38: #{tpu_custom_call.1} parent=5 // pred_check_branch
      %192 = sbr.rel (%p189) target = $region40
    $region39: #{tpu_custom_call.1} parent=5 // pred_region
      %s193 = ssub.s32 %s11, 1
      %s194 = smul.u32 19, %s16
      %p195 = scmp.lt.s32.totalorder %s194, 37
      %s196 = scalar_select %p195, %s194, 37
      %s197 = smul.addr %s196, 8
      %s198 = scalar_lea.vmem %s0, %s197
      %p199 = pneg %p37
      %p200 = pneg %p34
      %p201 = pneg %p58
      %p202 = pneg %p55
      %p203 = pneg %p79
      %p204 = pneg %p76
      %p205 = pneg %p100
      %p206 = pneg %p97
      %p207 = pneg %p121
      %p208 = pneg %p118
      %p209 = pneg %p147
      %p210 = pneg %p144
      %s211 = smul.u32 19, %s16
      %p212 = scmp.lt.s32.totalorder %s211, 37
      %s213 = scalar_select %p212, %s211, 37
      %s214 = smul.addr %s213, 8
      %s215 = scalar_lea.vmem %s5, %s214
      %s216 = smul.u32 19, %s16
      %p217 = scmp.lt.s32.totalorder %s216, 37
      %s218 = scalar_select %p217, %s216, 37
      %s219 = smul.addr %s218, 8
      %s220 = scalar_lea.vmem %s0, %s219
      %s221 = smul.u32 19, %s16
      %s222 = smul.u32 19, %s16
      %p223 = scmp.lt.s32.totalorder %s222, 37
      %s224 = scalar_select %p223, %s222, 37
      %s225 = smul.addr %s224, 8
      %s226 = scalar_lea.vmem %s5, %s225
      %s227 = smul.u32 19, %s16
      %v228 = vld [vmem:[%s220] sm:$0xff]
      %v229 = vld [vmem:[%s220 + $0x8] sm:$0xff]
      %v230 = vld [vmem:[%s220 + $0x10] sm:$0xff]
      %v231 = vld [vmem:[%s220 + $0x18] sm:$0xff]
      %v232 = vld [vmem:[%s220 + $0x20] sm:$0xff]
      %v233 = vld [vmem:[%s220 + $0x28] sm:$0xff]
      %v234 = vld [vmem:[%s220 + $0x30] sm:$0xff]
      %v235 = vld [vmem:[%s220 + $0x38] sm:$0xff]
      %v236 = vld [vmem:[%s220 + $0x40] sm:$0xff]
      %v237 = vld [vmem:[%s220 + $0x48] sm:$0xff]
      %v238 = vld [vmem:[%s220 + $0x50] sm:$0xff]
      %v239 = vld [vmem:[%s220 + $0x58] sm:$0xff]
      %v240 = vld [vmem:[%s220 + $0x60] sm:$0xff]
      %v241 = vld [vmem:[%s220 + $0x68] sm:$0xff]
      %v242 = vld [vmem:[%s220 + $0x70] sm:$0xff]
      %v243 = vld [vmem:[%s220 + $0x78] sm:$0xff]
      %v244 = vld [vmem:[%s220 + $0x80] sm:$0xff]
      %v245 = vld [vmem:[%s220 + $0x88] sm:$0xff]
      %v246 = vld [vmem:[%s220 + $0x90] sm:$0xff]
      %v247 = vld [vmem:[%s1] sm:$0xff]
      %v248 = vld [vmem:[%s1 + $0x8] sm:$0xff]
      %v249 = vld [vmem:[%s2] sm:$0x1]
      %v251 = vperm.slane %v249, 0
      %vm253 = vcmask 130048
      %v255 = vsel %vm253, %v228, 0
      %v258 = vsel %vm253, %v229, 0
      %v261 = vsel %vm253, %v230, 0
      %v264 = vsel %vm253, %v231, 0
      %v267 = vsel %vm253, %v232, 0
      %v270 = vsel %vm253, %v233, 0
      %v273 = vsel %vm253, %v234, 0
      %v276 = vsel %vm253, %v235, 0
      %v279 = vsel %vm253, %v236, 0
      %v282 = vsel %vm253, %v237, 0
      %v285 = vsel %vm253, %v238, 0
      %v288 = vsel %vm253, %v239, 0
      %v291 = vsel %vm253, %v240, 0
      %v294 = vsel %vm253, %v241, 0
      %v297 = vsel %vm253, %v242, 0
      %v300 = vsel %vm253, %v243, 0
      %v303 = vsel %vm253, %v244, 0
      %v306 = vsel %vm253, %v245, 0
      %v309 = vsel %vm253, %v246, 0
      %311 = vmatpush.msra.mxu0 0.0
      %312 = vmatpush.msra.mxu0 0.0
      %313 = vmatpush.msra.mxu0 0.0
      %314 = vmatpush.msra.mxu0 0.0
      %315 = vmatpush.msra.mxu0 0.0
      %316 = vmatpush.msra.mxu0 0.0
      %317 = vmatpush.msra.mxu0 0.0
      %318 = vmatpush.msra.mxu0 0.0
      %319 = vmatpush.msra.mxu0 0.0
      %320 = vmatpush.msra.mxu0 0.0
      %321 = vmatpush.msra.mxu0 0.0
      %322 = vmatpush.msra.mxu0 0.0
      %323 = vmatpush.msra.mxu0 0.0
      %324 = vmatpush.msra.mxu0 0.0
      %325 = vmatpush.msra.mxu0 %v248
      %326 = vmatpush.msra.mxu0 %v247
      %327 = vmatmul.f32.gmra.mxu0 %v255
      %v328 = vpop.f32.mrf.mxu0
      %v329 = vadd.f32 %v251, %v328
      %330 = vmatmul.f32.gmra.mxu0 %v258
      %v331 = vpop.f32.mrf.mxu0
      %v332 = vadd.f32 %v251, %v331
      %333 = vmatmul.f32.gmra.mxu0 %v261
      %v334 = vpop.f32.mrf.mxu0
      %v335 = vadd.f32 %v251, %v334
      %336 = vmatmul.f32.gmra.mxu0 %v264
      %v337 = vpop.f32.mrf.mxu0
      %v338 = vadd.f32 %v251, %v337
      %339 = vmatmul.f32.gmra.mxu0 %v267
      %v340 = vpop.f32.mrf.mxu0
      %v341 = vadd.f32 %v251, %v340
      %342 = vmatmul.f32.gmra.mxu0 %v270
      %v343 = vpop.f32.mrf.mxu0
      %v344 = vadd.f32 %v251, %v343
      %345 = vmatmul.f32.gmra.mxu0 %v273
      %v346 = vpop.f32.mrf.mxu0
      %v347 = vadd.f32 %v251, %v346
      %348 = vmatmul.f32.gmra.mxu0 %v276
      %v349 = vpop.f32.mrf.mxu0
      %v350 = vadd.f32 %v251, %v349
      %351 = vmatmul.f32.gmra.mxu0 %v279
      %v352 = vpop.f32.mrf.mxu0
      %v353 = vadd.f32 %v251, %v352
      %354 = vmatmul.f32.gmra.mxu0 %v282
      %v355 = vpop.f32.mrf.mxu0
      %v356 = vadd.f32 %v251, %v355
      %357 = vmatmul.f32.gmra.mxu0 %v285
      %v358 = vpop.f32.mrf.mxu0
      %v359 = vadd.f32 %v251, %v358
      %360 = vmatmul.f32.gmra.mxu0 %v288
      %v361 = vpop.f32.mrf.mxu0
      %v362 = vadd.f32 %v251, %v361
      %363 = vmatmul.f32.gmra.mxu0 %v291
      %v364 = vpop.f32.mrf.mxu0
      %v365 = vadd.f32 %v251, %v364
      %366 = vmatmul.f32.gmra.mxu0 %v294
      %v367 = vpop.f32.mrf.mxu0
      %v368 = vadd.f32 %v251, %v367
      %369 = vmatmul.f32.gmra.mxu0 %v297
      %v370 = vpop.f32.mrf.mxu0
      %v371 = vadd.f32 %v251, %v370
      %372 = vmatmul.f32.gmra.mxu0 %v300
      %v373 = vpop.f32.mrf.mxu0
      %v374 = vadd.f32 %v251, %v373
      %375 = vmatmul.f32.gmra.mxu0 %v303
      %v376 = vpop.f32.mrf.mxu0
      %v377 = vadd.f32 %v251, %v376
      %378 = vmatmul.f32.gmra.mxu0 %v306
      %v379 = vpop.f32.mrf.mxu0
      %v380 = vadd.f32 %v251, %v379
      %381 = vmatmul.f32.gmra.mxu0 %v309
      %v382 = vpop.f32.mrf.mxu0
      %v383 = vadd.f32 %v251, %v382
      %384 = vdwg.mxu0
      %v385 = vtanh.pop %v329
      %v386 = vtanh.pop %v332
      %v387 = vtanh.pop %v335
      %v388 = vtanh.pop %v338
      %v389 = vtanh.pop %v341
      %v390 = vtanh.pop %v344
      %v391 = vtanh.pop %v347
      %v392 = vtanh.pop %v350
      %v393 = vtanh.pop %v353
      %v394 = vtanh.pop %v356
      %v395 = vtanh.pop %v359
      %v396 = vtanh.pop %v362
      %v397 = vtanh.pop %v365
      %v398 = vtanh.pop %v368
      %v399 = vtanh.pop %v371
      %v400 = vtanh.pop %v374
      %v401 = vtanh.pop %v377
      %v402 = vtanh.pop %v380
      %v403 = vtanh.pop %v383
      %v404 = vld [vmem:[%s3] sm:$0xff]
      %v405 = vld [vmem:[%s3 + $0x8] sm:$0xff]
      %v406 = vld [vmem:[%s3 + $0x10] sm:$0xff]
      %v407 = vld [vmem:[%s3 + $0x18] sm:$0xff]
      %v408 = vld [vmem:[%s4] sm:$0x1]
      %v410 = vperm.slane %v408, 0
      %vm412 = vcmask 261120
      %v414 = vsel %vm412, %v385, 0
      %v417 = vsel %vm412, %v386, 0
      %v420 = vsel %vm412, %v387, 0
      %v423 = vsel %vm412, %v388, 0
      %v426 = vsel %vm412, %v389, 0
      %v429 = vsel %vm412, %v390, 0
      %v432 = vsel %vm412, %v391, 0
      %v435 = vsel %vm412, %v392, 0
      %v438 = vsel %vm412, %v393, 0
      %v441 = vsel %vm412, %v394, 0
      %v444 = vsel %vm412, %v395, 0
      %v447 = vsel %vm412, %v396, 0
      %v450 = vsel %vm412, %v397, 0
      %v453 = vsel %vm412, %v398, 0
      %v456 = vsel %vm412, %v399, 0
      %v459 = vsel %vm412, %v400, 0
      %v462 = vsel %vm412, %v401, 0
      %v465 = vsel %vm412, %v402, 0
      %v468 = vsel %vm412, %v403, 0
      %470 = vmatpush.msra.mxu0 0.0
      %471 = vmatpush.msra.mxu0 0.0
      %472 = vmatpush.msra.mxu0 0.0
      %473 = vmatpush.msra.mxu0 0.0
      %474 = vmatpush.msra.mxu0 0.0
      %475 = vmatpush.msra.mxu0 0.0
      %476 = vmatpush.msra.mxu0 0.0
      %477 = vmatpush.msra.mxu0 0.0
      %478 = vmatpush.msra.mxu0 0.0
      %479 = vmatpush.msra.mxu0 0.0
      %480 = vmatpush.msra.mxu0 0.0
      %481 = vmatpush.msra.mxu0 0.0
      %482 = vmatpush.msra.mxu0 %v407
      %483 = vmatpush.msra.mxu0 %v406
      %484 = vmatpush.msra.mxu0 %v405
      %485 = vmatpush.msra.mxu0 %v404
      %486 = vmatmul.f32.gmra.mxu0 %v414
      %v487 = vpop.f32.mrf.mxu0
      %v488 = vadd.f32 %v410, %v487
      %489 = vmatmul.f32.gmra.mxu0 %v417
      %v490 = vpop.f32.mrf.mxu0
      %v491 = vadd.f32 %v410, %v490
      %492 = vmatmul.f32.gmra.mxu0 %v420
      %v493 = vpop.f32.mrf.mxu0
      %v494 = vadd.f32 %v410, %v493
      %495 = vmatmul.f32.gmra.mxu0 %v423
      %v496 = vpop.f32.mrf.mxu0
      %v497 = vadd.f32 %v410, %v496
      %498 = vmatmul.f32.gmra.mxu0 %v426
      %v499 = vpop.f32.mrf.mxu0
      %v500 = vadd.f32 %v410, %v499
      %501 = vmatmul.f32.gmra.mxu0 %v429
      %v502 = vpop.f32.mrf.mxu0
      %v503 = vadd.f32 %v410, %v502
      %504 = vmatmul.f32.gmra.mxu0 %v432
      %v505 = vpop.f32.mrf.mxu0
      %v506 = vadd.f32 %v410, %v505
      %507 = vmatmul.f32.gmra.mxu0 %v435
      %v508 = vpop.f32.mrf.mxu0
      %v509 = vadd.f32 %v410, %v508
      %510 = vmatmul.f32.gmra.mxu0 %v438
      %v511 = vpop.f32.mrf.mxu0
      %v512 = vadd.f32 %v410, %v511
      %513 = vmatmul.f32.gmra.mxu0 %v441
      %v514 = vpop.f32.mrf.mxu0
      %v515 = vadd.f32 %v410, %v514
      %516 = vmatmul.f32.gmra.mxu0 %v444
      %v517 = vpop.f32.mrf.mxu0
      %v518 = vadd.f32 %v410, %v517
      %519 = vmatmul.f32.gmra.mxu0 %v447
      %v520 = vpop.f32.mrf.mxu0
      %v521 = vadd.f32 %v410, %v520
      %522 = vmatmul.f32.gmra.mxu0 %v450
      %v523 = vpop.f32.mrf.mxu0
      %v524 = vadd.f32 %v410, %v523
      %525 = vmatmul.f32.gmra.mxu0 %v453
      %v526 = vpop.f32.mrf.mxu0
      %v527 = vadd.f32 %v410, %v526
      %528 = vmatmul.f32.gmra.mxu0 %v456
      %v529 = vpop.f32.mrf.mxu0
      %v530 = vadd.f32 %v410, %v529
      %531 = vmatmul.f32.gmra.mxu0 %v459
      %v532 = vpop.f32.mrf.mxu0
      %v533 = vadd.f32 %v410, %v532
      %534 = vmatmul.f32.gmra.mxu0 %v462
      %v535 = vpop.f32.mrf.mxu0
      %v536 = vadd.f32 %v410, %v535
      %537 = vmatmul.f32.gmra.mxu0 %v465
      %v538 = vpop.f32.mrf.mxu0
      %v539 = vadd.f32 %v410, %v538
      %540 = vmatmul.f32.gmra.mxu0 %v468
      %v541 = vpop.f32.mrf.mxu0
      %v542 = vadd.f32 %v410, %v541
      %543 = vdwg.mxu0
      %v544 = vmul.f32 %v488, 0.5
      %v545 = vmul.f32 %v491, 0.5
      %v546 = vmul.f32 %v494, 0.5
      %v547 = vmul.f32 %v497, 0.5
      %v548 = vmul.f32 %v500, 0.5
      %v549 = vmul.f32 %v503, 0.5
      %v550 = vmul.f32 %v506, 0.5
      %v551 = vmul.f32 %v509, 0.5
      %v552 = vmul.f32 %v512, 0.5
      %v553 = vmul.f32 %v515, 0.5
      %v554 = vmul.f32 %v518, 0.5
      %v555 = vmul.f32 %v521, 0.5
      %v556 = vmul.f32 %v524, 0.5
      %v557 = vmul.f32 %v527, 0.5
      %v558 = vmul.f32 %v530, 0.5
      %v559 = vmul.f32 %v533, 0.5
      %v560 = vmul.f32 %v536, 0.5
      %v561 = vmul.f32 %v539, 0.5
      %v562 = vmul.f32 %v542, 0.5
      %v563 = vtanh.pop %v544
      %v564 = vtanh.pop %v545
      %v565 = vtanh.pop %v546
      %v566 = vtanh.pop %v547
      %v567 = vtanh.pop %v548
      %v568 = vtanh.pop %v549
      %v569 = vtanh.pop %v550
      %v570 = vtanh.pop %v551
      %v571 = vtanh.pop %v552
      %v572 = vtanh.pop %v553
      %v573 = vtanh.pop %v554
      %v574 = vtanh.pop %v555
      %v575 = vtanh.pop %v556
      %v576 = vtanh.pop %v557
      %v577 = vtanh.pop %v558
      %v578 = vtanh.pop %v559
      %v579 = vtanh.pop %v560
      %v580 = vtanh.pop %v561
      %v581 = vtanh.pop %v562
      %v582 = vadd.f32 %v563, 1.0
      %v583 = vadd.f32 %v564, 1.0
      %v584 = vadd.f32 %v565, 1.0
      %v585 = vadd.f32 %v566, 1.0
      %v586 = vadd.f32 %v567, 1.0
      %v587 = vadd.f32 %v568, 1.0
      %v588 = vadd.f32 %v569, 1.0
      %v589 = vadd.f32 %v570, 1.0
      %v590 = vadd.f32 %v571, 1.0
      %v591 = vadd.f32 %v572, 1.0
      %v592 = vadd.f32 %v573, 1.0
      %v593 = vadd.f32 %v574, 1.0
      %v594 = vadd.f32 %v575, 1.0
      %v595 = vadd.f32 %v576, 1.0
      %v596 = vadd.f32 %v577, 1.0
      %v597 = vadd.f32 %v578, 1.0
      %v598 = vadd.f32 %v579, 1.0
      %v599 = vadd.f32 %v580, 1.0
      %v600 = vadd.f32 %v581, 1.0
      %v601 = vmul.f32 %v582, 0.5
      %v602 = vmul.f32 %v583, 0.5
      %v603 = vmul.f32 %v584, 0.5
      %v604 = vmul.f32 %v585, 0.5
      %v605 = vmul.f32 %v586, 0.5
      %v606 = vmul.f32 %v587, 0.5
      %v607 = vmul.f32 %v588, 0.5
      %v608 = vmul.f32 %v589, 0.5
      %v609 = vmul.f32 %v590, 0.5
      %v610 = vmul.f32 %v591, 0.5
      %v611 = vmul.f32 %v592, 0.5
      %v612 = vmul.f32 %v593, 0.5
      %v613 = vmul.f32 %v594, 0.5
      %v614 = vmul.f32 %v595, 0.5
      %v615 = vmul.f32 %v596, 0.5
      %v616 = vmul.f32 %v597, 0.5
      %v617 = vmul.f32 %v598, 0.5
      %v618 = vmul.f32 %v599, 0.5
      %v619 = vmul.f32 %v600, 0.5
      %620 = vst.msk [vmem:[%s226] sm:$0xff] %vm412, %v601
      %621 = vst.msk [vmem:[%s226 + $0x8] sm:$0xff] %vm412, %v602
      %622 = vst.msk [vmem:[%s226 + $0x10] sm:$0xff] %vm412, %v603
      %623 = vst.msk [vmem:[%s226 + $0x18] sm:$0xff] %vm412, %v604
      %624 = vst.msk [vmem:[%s226 + $0x20] sm:$0xff] %vm412, %v605
      %625 = vst.msk [vmem:[%s226 + $0x28] sm:$0xff] %vm412, %v606
      %626 = vst.msk [vmem:[%s226 + $0x30] sm:$0xff] %vm412, %v607
      %627 = vst.msk [vmem:[%s226 + $0x38] sm:$0xff] %vm412, %v608
      %628 = vst.msk [vmem:[%s226 + $0x40] sm:$0xff] %vm412, %v609
      %629 = vst.msk [vmem:[%s226 + $0x48] sm:$0xff] %vm412, %v610
      %630 = vst.msk [vmem:[%s226 + $0x50] sm:$0xff] %vm412, %v611
      %631 = vst.msk [vmem:[%s226 + $0x58] sm:$0xff] %vm412, %v612
      %632 = vst.msk [vmem:[%s226 + $0x60] sm:$0xff] %vm412, %v613
      %633 = vst.msk [vmem:[%s226 + $0x68] sm:$0xff] %vm412, %v614
      %634 = vst.msk [vmem:[%s226 + $0x70] sm:$0xff] %vm412, %v615
      %635 = vst.msk [vmem:[%s226 + $0x78] sm:$0xff] %vm412, %v616
      %636 = vst.msk [vmem:[%s226 + $0x80] sm:$0xff] %vm412, %v617
      %637 = vst.msk [vmem:[%s226 + $0x88] sm:$0xff] %vm412, %v618
      %638 = vst.msk [vmem:[%s226 + $0x90] sm:$0xff] %vm412, %v619
      %s639 = smul.u32 19, %s16
      %p640 = scmp.lt.s32.totalorder %s639, 37
      %s641 = scalar_select %p640, %s639, 37
      %s642 = smul.addr %s641, 8
      %s643 = scalar_lea.vmem %s5, %s642
      // Predicated region
      $region41: #{tpu_custom_call.1} parent=39 // pred_check
        %p644 = pneg %p144
      $region42: #{tpu_custom_call.1} parent=39 // pred_check_branch
        %646 = sbr.rel (%p644) target = $region44
      $region43: #{tpu_custom_call.1} parent=39 // pred_region
        %s647 = smul.u32 19, %s16
      $region44: #{tpu_custom_call.1} parent=39 // pred_fallthru
        _
    $region40: #{tpu_custom_call.1} parent=5 // pred_fallthru
      _
    %p648 = scmp.le.s32.totalorder 2, %s11
    // Predicated region
    $region45: #{tpu_custom_call.1} parent=5 // pred_check
      %p649 = pneg %p648
    $region46: #{tpu_custom_call.1} parent=5 // pred_check_branch
      %651 = sbr.rel (%p649) target = $region48
    $region47: #{tpu_custom_call.1} parent=5 // pred_region
      %s652 = ssub.s32 %s11, 2
      // Predicated region
      $region49: #{tpu_custom_call.1} parent=47 // pred_check
        %p653 = pneg %p150
      $region50: #{tpu_custom_call.1} parent=47 // pred_check_branch
        %655 = sbr.rel (%p653) target = $region52
      $region51: #{tpu_custom_call.1} parent=47 // pred_region
        %s656 = smul.u32 19, %s17
        %p657 = scmp.lt.s32.totalorder %s656, 37
        %s658 = scalar_select %p657, %s656, 37
        %s659 = smul.addr %s658, 8
        %s660 = scalar_lea.vmem %s5, %s659
      $region52: #{tpu_custom_call.1} parent=47 // pred_fallthru
        _
    $region48: #{tpu_custom_call.1} parent=5 // pred_fallthru
      _
  $region6: #{tpu_custom_call.1} parent=0 // loop_footer
    %s15 = sadd.s32 1, %s11
  $region7: #{tpu_custom_call.1} parent=0 // loop_footer_branch
    %10 = sbr.rel target = $region3
  $region8: #{tpu_custom_call.1} parent=0 // loop_exit
    _

</llo_original>
